<compile_context>
chip_gen: v6e
topology: v6e:2x2x1
jax: 0.10.0
libtpu: 0.0.40
codegen_flags: <defaults>
</compile_context>

<pallas_src>
import math

import jax
import jax.numpy as jnp
from jax.experimental import pallas as pl
from jax.experimental.pallas import tpu as pltpu

_INV_SQRT2 = 1.0 / math.sqrt(2.0)
_WEIGHT_BUDGET_BYTES = 24 * 1024 * 1024  # resident bf16 W1+W2 budget per core


def _erf_poly(x):
    # Abramowitz & Stegun 7.1.26 erf polynomial (|abs err| < 1.5e-7).
    # VALU-trimmed: one select re-applies the sign (instead of sign/abs
    # multiply), the divide goes to the EUP via pl.reciprocal, exp is EUP.
    a1, a2, a3, a4, a5 = (0.254829592, -0.284496736, 1.421413741,
                          -1.453152027, 1.061405429)
    p = 0.3275911
    ax = jnp.abs(x)
    t = pl.reciprocal(1.0 + p * ax)
    poly = ((((a5 * t + a4) * t + a3) * t + a2) * t + a1) * t
    r = 1.0 - poly * jnp.exp(-ax * ax)
    return jnp.where(x >= 0, r, -r)


def _gelu_exact(x):
    # Matches nn.GELU() default (approximate='none').
    return 0.5 * x * (1.0 + _erf_poly(x * _INV_SQRT2))


def _mlp_kernel(x_ref, w1_ref, b1_ref, w2_ref, b2_ref, o_ref, acc_ref):
    h_idx = pl.program_id(1)

    # fc1 on the MXU: bf16 operands, f32 accumulation.
    xb = x_ref[...].astype(jnp.bfloat16)
    h = jnp.dot(xb, w1_ref[...], preferred_element_type=jnp.float32)
    h = h + b1_ref[...]

    # Exact (erf-form) GELU on the hidden slice, f32 elementwise, in VMEM.
    a = _gelu_exact(h).astype(jnp.bfloat16)

    # fc2 partial product for this hidden slice, accumulated in f32.
    y = jnp.dot(a, w2_ref[...], preferred_element_type=jnp.float32)

    @pl.when(h_idx == 0)
    def _():
        acc_ref[...] = jnp.zeros_like(acc_ref)

    acc_ref[...] += y

    @pl.when(h_idx == pl.num_programs(1) - 1)
    def _():
        o_ref[...] = (acc_ref[...] + b2_ref[...]).astype(o_ref.dtype)


def _round_up(x, m):
    return (x + m - 1) // m * m


def _pick_tile_m(m, block_m):
    if m <= 256:
        return _round_up(m, 16)            # bf16 sublane packing (16)
    tile_m = min(block_m, _round_up(m, 128))
    # v7x megacore: ensure >= 2 row tiles so both TensorCores get work.
    while tile_m > 128 and pl.cdiv(m, tile_m) < 2:
        tile_m //= 2
    return tile_m


def _pick_tile_h(hidden, d_in, d_out, block_h):
    """Keep the whole hidden dim resident when the bf16 weights fit a
    conservative per-core budget; otherwise tile hidden (multiple of 128
    dividing `hidden`) and accumulate across a reduction grid axis."""
    if block_h is not None:
        return block_h
    w_bytes = hidden * (d_in + d_out) * 2                # bf16, 1 buffer
    if w_bytes <= _WEIGHT_BUDGET_BYTES or hidden % 128 != 0:
        return hidden
    for cand in range(hidden - 128, 127, -128):
        if hidden % cand == 0 and 2 * cand * (d_in + d_out) * 2 <= _WEIGHT_BUDGET_BYTES:
            return cand
    return 128


def _vmem_limit_bytes(tile_m, d_in, d_out, tile_h, n_h):
    nbuf_w = 1 if n_h == 1 else 2
    x_b = 2 * tile_m * d_in * 4                      # f32 x tile, double-buf
    o_b = 2 * tile_m * d_out * 4                     # f32 out tile, double-buf
    w_b = nbuf_w * (d_in * tile_h + tile_h * d_out) * 2   # bf16 weights
    bias_b = nbuf_w * tile_h * 4 + d_out * 4
    acc_b = tile_m * d_out * 4                       # accumulator scratch
    act_b = 3 * tile_m * tile_h * 4                  # hidden act + temporaries
    total = x_b + o_b + w_b + bias_b + acc_b + act_b
    return int(min(64 * 1024 * 1024, max(32 * 1024 * 1024, 2 * total)))


def prepare_mlp_params(w1, b1, w2, b2):
    """One-time prep of nn.Linear parameters into kernel layout (hoisted out
    of the forward path): transpose to row-major (in, out) and cast weights
    to bf16 for the MXU; biases stay f32 rows for the f32 epilogue."""
    return {
        "w1": jnp.asarray(w1).T.astype(jnp.bfloat16),          # (d_in, hidden)
        "b1": jnp.asarray(b1).reshape(1, -1).astype(jnp.float32),
        "w2": jnp.asarray(w2).T.astype(jnp.bfloat16),          # (hidden, d_out)
        "b2": jnp.asarray(b2).reshape(1, -1).astype(jnp.float32),
    }


def mlp_forward(x, params, *, block_m=512, block_h=None):
    """Fused fc1 -> GELU -> fc2. x: (..., in_features) -> (..., out_features)."""
    d_in, hidden = params["w1"].shape
    hidden_w, d_out = params["w2"].shape
    assert hidden == hidden_w
    assert x.shape[-1] == d_in

    orig_shape = x.shape
    x2 = x.reshape(-1, d_in).astype(jnp.float32)
    m = x2.shape[0]

    tile_m = _pick_tile_m(m, block_m)
    m_pad = _round_up(m, tile_m)
    if m_pad != m:
        x2 = jnp.pad(x2, ((0, m_pad - m), (0, 0)))

    tile_h = _pick_tile_h(hidden, d_in, d_out, block_h)
    assert hidden % tile_h == 0
    n_h = hidden // tile_h

    # Single-buffer the grid-invariant operands (weights/biases) when the
    # hidden axis is not tiled -- their index_map is constant so a second
    # pipeline buffer is pure VMEM waste. With hidden tiling they change per
    # step, so keep the default double-buffering.
    res_mode = pl.Buffered(1) if n_h == 1 else None

    grid = (m_pad // tile_m, n_h)
    out = pl.pallas_call(
        _mlp_kernel,
        out_shape=jax.ShapeDtypeStruct((m_pad, d_out), jnp.float32),
        grid=grid,
        in_specs=[
            pl.BlockSpec((tile_m, d_in), lambda i, h: (i, 0)),           # x rows
            pl.BlockSpec((d_in, tile_h), lambda i, h: (0, h),            # W1
                         pipeline_mode=res_mode),
            pl.BlockSpec((1, tile_h), lambda i, h: (0, h),               # b1
                         pipeline_mode=res_mode),
            pl.BlockSpec((tile_h, d_out), lambda i, h: (h, 0),           # W2
                         pipeline_mode=res_mode),
            pl.BlockSpec((1, d_out), lambda i, h: (0, 0),                # b2
                         pipeline_mode=pl.Buffered(1)),
        ],
        out_specs=pl.BlockSpec((tile_m, d_out), lambda i, h: (i, 0)),
        scratch_shapes=[pltpu.VMEM((tile_m, d_out), jnp.float32)],
        compiler_params=pltpu.CompilerParams(
            dimension_semantics=("parallel", "arbitrary"),
            vmem_limit_bytes=_vmem_limit_bytes(tile_m, d_in, d_out, tile_h, n_h),
        ),
    )(x2, params["w1"], params["b1"], params["w2"], params["b2"])

    out = out[:m]
    return out.reshape(*orig_shape[:-1], d_out)


if __name__ == "__main__":
    key = jax.random.PRNGKey(0)
    k_x, k_w1, k_b1, k_w2, k_b2 = jax.random.split(key, 5)

    # Small shapes consistent with Mlp: tokens x features,
    # in_features=32, hidden_features=64, out_features=32 (default = in).
    B, S, D_IN, HIDDEN = 2, 8, 32, 64
    D_OUT = D_IN

    x = jax.random.normal(k_x, (B, S, D_IN), jnp.float32)

    # PyTorch-like Linear init (uniform +-1/sqrt(fan_in)), deterministic.
    bound1 = 1.0 / math.sqrt(D_IN)
    w1 = jax.random.uniform(k_w1, (HIDDEN, D_IN), jnp.float32, -bound1, bound1)
    b1 = jax.random.uniform(k_b1, (HIDDEN,), jnp.float32, -bound1, bound1)
    bound2 = 1.0 / math.sqrt(HIDDEN)
    w2 = jax.random.uniform(k_w2, (D_OUT, HIDDEN), jnp.float32, -bound2, bound2)
    b2 = jax.random.uniform(k_b2, (D_OUT,), jnp.float32, -bound2, bound2)

    params = prepare_mlp_params(w1, b1, w2, b2)   # one-time weight prep
    out = mlp_forward(x, params)
    out = jax.block_until_ready(out)

    # Reference 1: same bf16-operand / f32-accumulate matmuls as the kernel
    # (isolates kernel correctness from bf16 quantization of the weights).
    x2 = x.reshape(-1, D_IN)
    h_ref = jnp.dot(x2.astype(jnp.bfloat16), params["w1"],
                    preferred_element_type=jnp.float32) + params["b1"]
    a_ref = jax.nn.gelu(h_ref, approximate=False)
    y_bf = (jnp.dot(a_ref.astype(jnp.bfloat16), params["w2"],
                    preferred_element_type=jnp.float32) + params["b2"])
    y_bf = y_bf.reshape(B, S, D_OUT)

    # Reference 2: full-f32 PyTorch-semantics Mlp (dropout p=0 is identity).
    h32 = jnp.einsum("bsd,hd->bsh", x, w1) + b1
    y32 = jnp.einsum("bsh,oh->bso", jax.nn.gelu(h32, approximate=False), w2) + b2

    assert out.shape == (B, S, D_OUT), out.shape
    assert out.dtype == jnp.float32
    assert bool(jnp.all(jnp.isfinite(out)))
    err_bf = float(jnp.max(jnp.abs(out - y_bf)))
    err_32 = float(jnp.max(jnp.abs(out - y32)))
    assert err_bf < 5e-3, err_bf      # kernel vs same-precision reference
    assert err_32 < 5e-2, err_32      # kernel vs f32 module semantics
    print("KERNEL_OK")
</pallas_src>

<mosaic_0001>
module attributes {stable_mosaic.version = 11 : i64} {
  func.func @_mlp_kernel(%arg0: i32, %arg1: i32, %arg2: memref<16x32xf32, #tpu.memory_space<vmem>>, %arg3: memref<32x64xbf16, #tpu.memory_space<vmem>>, %arg4: memref<1x64xf32, #tpu.memory_space<vmem>>, %arg5: memref<64x32xbf16, #tpu.memory_space<vmem>>, %arg6: memref<1x32xf32, #tpu.memory_space<vmem>>, %arg7: memref<16x32xf32, #tpu.memory_space<vmem>>, %arg8: memref<16x32xf32, #tpu.memory_space<vmem>>) attributes {dimension_semantics = [#tpu.dimension_semantics<parallel>, #tpu.dimension_semantics<arbitrary>], iteration_bounds = array<i64: 1, 1>, scalar_prefetch = 0 : i64, scratch_operands = 1 : i64, tpu.core_type = #tpu.core_type<tc>, window_params = [{transform_indices = @transform_0, window_bounds = array<i64: 16, 32>}, {pipeline_mode = #tpu.pipeline_mode<synchronous>, transform_indices = @transform_1, window_bounds = array<i64: 32, 64>}, {pipeline_mode = #tpu.pipeline_mode<synchronous>, transform_indices = @transform_2, window_bounds = array<i64: 1, 64>}, {pipeline_mode = #tpu.pipeline_mode<synchronous>, transform_indices = @transform_3, window_bounds = array<i64: 64, 32>}, {pipeline_mode = #tpu.pipeline_mode<synchronous>, transform_indices = @transform_4, window_bounds = array<i64: 1, 32>}, {transform_indices = @transform_5, window_bounds = array<i64: 16, 32>}]} {
    %c0 = arith.constant 0 : index
    %c0_0 = arith.constant 0 : index
    %0 = vector.load %arg2[%c0, %c0_0] : memref<16x32xf32, #tpu.memory_space<vmem>>, vector<16x32xf32>
    %1 = arith.truncf %0 : vector<16x32xf32> to vector<16x32xbf16>
    %c0_1 = arith.constant 0 : index
    %c0_2 = arith.constant 0 : index
    %2 = vector.load %arg3[%c0_1, %c0_2] : memref<32x64xbf16, #tpu.memory_space<vmem>>, vector<32x64xbf16>
    %cst = arith.constant dense<0.000000e+00> : vector<16x64xf32>
    %3 = tpu.matmul %1, %2, %cst {dimension_numbers = #tpu.dot_dimension_numbers<[1], [0], [0], [1], [0, 0, 1, 1], [], []>} : vector<16x32xbf16>, vector<32x64xbf16>, vector<16x64xf32> -> vector<16x64xf32>
    %c0_3 = arith.constant 0 : index
    %c0_4 = arith.constant 0 : index
    %4 = vector.load %arg4[%c0_3, %c0_4] : memref<1x64xf32, #tpu.memory_space<vmem>>, vector<1x64xf32>
    %5 = vector.broadcast %4 : vector<1x64xf32> to vector<16x64xf32>
    %6 = arith.addf %3, %5 : vector<16x64xf32>
    %cst_5 = arith.constant 5.000000e-01 : f32
    %7 = vector.broadcast %cst_5 : f32 to vector<16x64xf32>
    %8 = arith.mulf %7, %6 : vector<16x64xf32>
    %cst_6 = arith.constant 0.707106769 : f32
    %9 = vector.broadcast %cst_6 : f32 to vector<16x64xf32>
    %10 = arith.mulf %6, %9 : vector<16x64xf32>
    %11 = math.absf %10 : vector<16x64xf32>
    %cst_7 = arith.constant 0.327591091 : f32
    %12 = vector.broadcast %cst_7 : f32 to vector<16x64xf32>
    %13 = arith.mulf %12, %11 : vector<16x64xf32>
    %cst_8 = arith.constant 1.000000e+00 : f32
    %14 = vector.broadcast %cst_8 : f32 to vector<16x64xf32>
    %15 = arith.addf %14, %13 : vector<16x64xf32>
    %16 = tpu.reciprocal %15 : vector<16x64xf32> -> vector<16x64xf32>
    %cst_9 = arith.constant 1.06140542 : f32
    %17 = vector.broadcast %cst_9 : f32 to vector<16x64xf32>
    %18 = arith.mulf %17, %16 : vector<16x64xf32>
    %cst_10 = arith.constant -1.45315206 : f32
    %19 = vector.broadcast %cst_10 : f32 to vector<16x64xf32>
    %20 = arith.addf %18, %19 : vector<16x64xf32>
    %21 = arith.mulf %20, %16 : vector<16x64xf32>
    %cst_11 = arith.constant 1.42141378 : f32
    %22 = vector.broadcast %cst_11 : f32 to vector<16x64xf32>
    %23 = arith.addf %21, %22 : vector<16x64xf32>
    %24 = arith.mulf %23, %16 : vector<16x64xf32>
    %cst_12 = arith.constant -0.284496725 : f32
    %25 = vector.broadcast %cst_12 : f32 to vector<16x64xf32>
    %26 = arith.addf %24, %25 : vector<16x64xf32>
    %27 = arith.mulf %26, %16 : vector<16x64xf32>
    %cst_13 = arith.constant 0.254829586 : f32
    %28 = vector.broadcast %cst_13 : f32 to vector<16x64xf32>
    %29 = arith.addf %27, %28 : vector<16x64xf32>
    %30 = arith.mulf %29, %16 : vector<16x64xf32>
    %cst_14 = arith.constant 0.000000e+00 : f32
    %31 = vector.broadcast %cst_14 : f32 to vector<16x64xf32>
    %32 = arith.subf %31, %11 : vector<16x64xf32>
    %33 = arith.mulf %32, %11 : vector<16x64xf32>
    %34 = math.exp %33 : vector<16x64xf32>
    %35 = arith.mulf %30, %34 : vector<16x64xf32>
    %cst_15 = arith.constant 1.000000e+00 : f32
    %36 = vector.broadcast %cst_15 : f32 to vector<16x64xf32>
    %37 = arith.subf %36, %35 : vector<16x64xf32>
    %cst_16 = arith.constant 0.000000e+00 : f32
    %38 = vector.broadcast %cst_16 : f32 to vector<16x64xf32>
    %39 = arith.cmpf oge, %10, %38 : vector<16x64xf32>
    %cst_17 = arith.constant 0.000000e+00 : f32
    %40 = vector.broadcast %cst_17 : f32 to vector<16x64xf32>
    %41 = arith.subf %40, %37 : vector<16x64xf32>
    %42 = arith.select %39, %37, %41 : vector<16x64xi1>, vector<16x64xf32>
    %cst_18 = arith.constant 1.000000e+00 : f32
    %43 = vector.broadcast %cst_18 : f32 to vector<16x64xf32>
    %44 = arith.addf %43, %42 : vector<16x64xf32>
    %45 = arith.mulf %8, %44 : vector<16x64xf32>
    %46 = arith.truncf %45 : vector<16x64xf32> to vector<16x64xbf16>
    %c0_19 = arith.constant 0 : index
    %c0_20 = arith.constant 0 : index
    %47 = vector.load %arg5[%c0_19, %c0_20] : memref<64x32xbf16, #tpu.memory_space<vmem>>, vector<64x32xbf16>
    %cst_21 = arith.constant dense<0.000000e+00> : vector<16x32xf32>
    %48 = tpu.matmul %46, %47, %cst_21 {dimension_numbers = #tpu.dot_dimension_numbers<[1], [0], [0], [1], [0, 0, 1, 1], [], []>} : vector<16x64xbf16>, vector<64x32xbf16>, vector<16x32xf32> -> vector<16x32xf32>
    %c0_i32 = arith.constant 0 : i32
    %49 = arith.cmpi eq, %arg1, %c0_i32 : i32
    %50 = arith.extui %49 : i1 to i32
    %c0_i32_22 = arith.constant 0 : i32
    %51 = arith.cmpi ne, %50, %c0_i32_22 : i32
    scf.if %51 {
      %cst_29 = arith.constant 0.000000e+00 : f32
      %58 = vector.broadcast %cst_29 : f32 to vector<16x32xf32>
      %c0_30 = arith.constant 0 : index
      %c0_31 = arith.constant 0 : index
      %59 = vector.load %arg8[%c0_30, %c0_31] : memref<16x32xf32, #tpu.memory_space<vmem>>, vector<16x32xf32>
      tpu.vector_store %arg8[%c0_30, %c0_31], %58 {strides = array<i32>} : memref<16x32xf32, #tpu.memory_space<vmem>>, vector<16x32xf32>,
    } else {
    }
    %c0_23 = arith.constant 0 : index
    %c0_24 = arith.constant 0 : index
    %52 = vector.load %arg8[%c0_23, %c0_24] : memref<16x32xf32, #tpu.memory_space<vmem>>, vector<16x32xf32>
    %53 = arith.addf %52, %48 : vector<16x32xf32>
    %c0_25 = arith.constant 0 : index
    %c0_26 = arith.constant 0 : index
    %54 = vector.load %arg8[%c0_25, %c0_26] : memref<16x32xf32, #tpu.memory_space<vmem>>, vector<16x32xf32>
    tpu.vector_store %arg8[%c0_25, %c0_26], %53 {strides = array<i32>} : memref<16x32xf32, #tpu.memory_space<vmem>>, vector<16x32xf32>,
    %c0_i32_27 = arith.constant 0 : i32
    %55 = arith.cmpi eq, %arg1, %c0_i32_27 : i32
    %56 = arith.extui %55 : i1 to i32
    %c0_i32_28 = arith.constant 0 : i32
    %57 = arith.cmpi ne, %56, %c0_i32_28 : i32
    scf.if %57 {
      %c0_29 = arith.constant 0 : index
      %c0_30 = arith.constant 0 : index
      %58 = vector.load %arg8[%c0_29, %c0_30] : memref<16x32xf32, #tpu.memory_space<vmem>>, vector<16x32xf32>
      %c0_31 = arith.constant 0 : index
      %c0_32 = arith.constant 0 : index
      %59 = vector.load %arg6[%c0_31, %c0_32] : memref<1x32xf32, #tpu.memory_space<vmem>>, vector<1x32xf32>
      %60 = vector.broadcast %59 : vector<1x32xf32> to vector<16x32xf32>
      %61 = arith.addf %58, %60 : vector<16x32xf32>
      %c0_33 = arith.constant 0 : index
      %c0_34 = arith.constant 0 : index
      %62 = vector.load %arg7[%c0_33, %c0_34] : memref<16x32xf32, #tpu.memory_space<vmem>>, vector<16x32xf32>
      tpu.vector_store %arg7[%c0_33, %c0_34], %61 {strides = array<i32>} : memref<16x32xf32, #tpu.memory_space<vmem>>, vector<16x32xf32>,
    } else {
    }
    return
  }
  func.func @transform_0(%arg0: i32, %arg1: i32) -> (i32, i32) {
    %c0_i32 = arith.constant 0 : i32
    %c0_i32_0 = arith.constant 0 : i32
    return %arg0, %c0_i32 : i32, i32
  }
  func.func @transform_1(%arg0: i32, %arg1: i32) -> (i32, i32) {
    %c0_i32 = arith.constant 0 : i32
    %c0_i32_0 = arith.constant 0 : i32
    return %c0_i32, %arg1 : i32, i32
  }
  func.func @transform_2(%arg0: i32, %arg1: i32) -> (i32, i32) {
    %c0_i32 = arith.constant 0 : i32
    %c0_i32_0 = arith.constant 0 : i32
    return %c0_i32, %arg1 : i32, i32
  }
  func.func @transform_3(%arg0: i32, %arg1: i32) -> (i32, i32) {
    %c0_i32 = arith.constant 0 : i32
    %c0_i32_0 = arith.constant 0 : i32
    return %arg1, %c0_i32 : i32, i32
  }
  func.func @transform_4(%arg0: i32, %arg1: i32) -> (i32, i32) {
    %c0_i32 = arith.constant 0 : i32
    %c0_i32_0 = arith.constant 0 : i32
    %c0_i32_1 = arith.constant 0 : i32
    return %c0_i32, %c0_i32_0 : i32, i32
  }
  func.func @transform_5(%arg0: i32, %arg1: i32) -> (i32, i32) {
    %c0_i32 = arith.constant 0 : i32
    %c0_i32_0 = arith.constant 0 : i32
    return %arg0, %c0_i32 : i32, i32
  }
}

</mosaic_0001>

<llo_original>
// kernel: tpu_custom_call.1
$region0: #{tpu_custom_call.1}
  #allocation0 [shape = 'u32[]', space=smem, size = 0x4, offset = 0x4, fixed_abs, tag = 'smem constant byte address 0x4 - core index']
  #allocation1 [shape = 'u32[144,128]{1,0:T(1,128)}', space=vmem, size = 0x12000, scoped, tag = 'internal scratch']
  #allocation2 [shape = 'f32[16,32]{1,0:T(8,128)}', space=vmem, size = 0x2000, scoped, tag = 'scratch operand']
  %s0 = inlined_call_operand.vmem [shape: f32[16,32], index: 0, kind: input, shape index: {}]
  %s1 = inlined_call_operand.vmem [shape: bf16[32,64], index: 1, kind: input, shape index: {}]
  %s2 = inlined_call_operand.vmem [shape: f32[1,64], index: 2, kind: input, shape index: {}]
  %s3 = inlined_call_operand.vmem [shape: bf16[64,32], index: 3, kind: input, shape index: {}]
  %s4 = inlined_call_operand.vmem [shape: f32[1,32], index: 4, kind: input, shape index: {}]
  %s5 = inlined_call_operand.hbm [shape: f32[16,32], index: 5, kind: output, shape index: {}]
  %s6 = sld [smem:[#allocation0]]
  $region38: #{tpu_custom_call.1} parent=0
    _
  %s8 = ssub.s32 1, %s6
  %s9 = scalar_select 0, %s8, %s6
  $region1: #{tpu_custom_call.1} parent=0
    #allocation3 [shape = 'u8[8192]{0}', space=vmem, size = 0x2000, scoped, tag = 'output window, operand 0, single buffered']
    #allocation4 [shape = 's32[1]{0}', space=sflag, size = 0x4, scoped, tag = 'scoped memory for tpu_custom_call.1']
    %10 = vsyncpa [#allocation4], 0
    // Predicated region
    $region2: #{tpu_custom_call.1} parent=1 // pred_check
      _
    $region3: #{tpu_custom_call.1} parent=1 // pred_check_branch
      %12 = sbr.rel (0) target = $region5
    $region4: #{tpu_custom_call.1} parent=1 // pred_region
      _
    $region5: #{tpu_custom_call.1} parent=1 // pred_fallthru
      _
    // Predicated region
    $region6: #{tpu_custom_call.1} parent=1 // pred_check
      _
    $region7: #{tpu_custom_call.1} parent=1 // pred_check_branch
      %14 = sbr.rel (0) target = $region9
    $region8: #{tpu_custom_call.1} parent=1 // pred_region
      _
    $region9: #{tpu_custom_call.1} parent=1 // pred_fallthru
      _
    // Predicated region
    $region10: #{tpu_custom_call.1} parent=1 // pred_check
      _
    $region11: #{tpu_custom_call.1} parent=1 // pred_check_branch
      %16 = sbr.rel (0) target = $region13
    $region12: #{tpu_custom_call.1} parent=1 // pred_region
      _
    $region13: #{tpu_custom_call.1} parent=1 // pred_fallthru
      _
    // Predicated region
    $region14: #{tpu_custom_call.1} parent=1 // pred_check
      _
    $region15: #{tpu_custom_call.1} parent=1 // pred_check_branch
      %18 = sbr.rel (0) target = $region17
    $region16: #{tpu_custom_call.1} parent=1 // pred_region
      _
    $region17: #{tpu_custom_call.1} parent=1 // pred_fallthru
      _
    // Predicated region
    $region18: #{tpu_custom_call.1} parent=1 // pred_check
      _
    $region19: #{tpu_custom_call.1} parent=1 // pred_check_branch
      %20 = sbr.rel (0) target = $region21
    $region20: #{tpu_custom_call.1} parent=1 // pred_region
      _
    $region21: #{tpu_custom_call.1} parent=1 // pred_fallthru
      _
    %v22 = vld [vmem:[%s0] sm:$0xff]
    %v23 = vld [vmem:[%s0 + $0x8] sm:$0xff]
    %v24 = vpack.c.bf16 %v23, %v22
    %v25 = vld [vmem:[%s1] sm:$0xf]
    %v26 = vld [vmem:[%s1 + $0x4] sm:$0xf]
    %v27 = vld [vmem:[%s1 + $0x8] sm:$0xf]
    %v28 = vld [vmem:[%s1 + $0xc] sm:$0xf]
    %v29 = vld [vmem:[%s2] sm:$0x1]
    %v31 = vlaneseq
    %v32 = vshrl.u32 %v31, 7
    %v33 = vsub.s32 0, %v32
    %v34 = vrot.slane %v29, %v33
    %v40 = vunpack.c.l.b16 %v25
    %v41 = vunpack.c.l.b16 %v26
    %v42 = vunpack.c.l.b16 %v27
    %v43 = vunpack.c.l.b16 %v28
    %v44 = vpack.c.b16 %v41, %v40
    %v45 = vpack.c.b16 %v43, %v42
    %vm48 = vcmask 261120
    %v50 = vsel %vm48, %v24, 0
    %52 = vmatprep.subr.bf16.mxu0 0
    %53 = vmatpush1.bf16.msra.mxu0 0
    %54 = vmatprep.subr.bf16.mxu0 0
    %55 = vmatpush1.bf16.msra.mxu0 0
    %56 = vmatprep.subr.bf16.mxu0 0
    %57 = vmatpush1.bf16.msra.mxu0 0
    %58 = vmatprep.subr.bf16.mxu0 0
    %59 = vmatpush1.bf16.msra.mxu0 0
    %60 = vmatprep.subr.bf16.mxu0 0
    %61 = vmatpush1.bf16.msra.mxu0 0
    %62 = vmatprep.subr.bf16.mxu0 0
    %63 = vmatpush1.bf16.msra.mxu0 0
    %64 = vmatprep.subr.bf16.mxu0 0
    %65 = vmatpush1.bf16.msra.mxu0 %v45
    %66 = vmatprep.subr.bf16.mxu0 0
    %67 = vmatpush1.bf16.msra.mxu0 %v44
    %68 = vmatprep.subr.bf16.mxu0 0
    %69 = vmatpush2.bf16.msra.mxu0 0
    %70 = vmatprep.subr.bf16.mxu0 0
    %71 = vmatpush2.bf16.msra.mxu0 0
    %72 = vmatprep.subr.bf16.mxu0 0
    %73 = vmatpush2.bf16.msra.mxu0 0
    %74 = vmatprep.subr.bf16.mxu0 0
    %75 = vmatpush2.bf16.msra.mxu0 0
    %76 = vmatprep.subr.bf16.mxu0 0
    %77 = vmatpush2.bf16.msra.mxu0 0
    %78 = vmatprep.subr.bf16.mxu0 0
    %79 = vmatpush2.bf16.msra.mxu0 0
    %80 = vmatprep.subr.bf16.mxu0 0
    %81 = vmatpush2.bf16.msra.mxu0 0
    %82 = vmatprep.subr.bf16.mxu0 0
    %83 = vmatpush2.bf16.msra.mxu0 0
    %84 = vmatprep.mubr.bf16.mxu0 0
    %85 = vmatmul.mubr.bf16.gmra.mxu0 %v50
    %v86 = vpop.f32.mrf.mxu0
    %v87 = vadd.f32 %v34, %v86
    %v88 = vpop.f32.mrf.mxu0
    %v89 = vpop.f32.mrf.mxu0
    %v90 = vadd.f32 %v34, %v89
    %v91 = vpop.f32.mrf.mxu0
    %92 = vdwg.mxu0
    %v93 = vmul.f32 %v87, 0.5
    %v94 = vmul.f32 %v90, 0.5
    %v95 = vmul.f32 %v87, 0.70710677
    %v96 = vmul.f32 %v90, 0.70710677
    %v97 = vand.u32 2147483647, %v95
    %v98 = vand.u32 2147483647, %v96
    %v99 = vmul.f32 %v97, 0.3275911
    %v100 = vmul.f32 %v98, 0.3275911
    %v101 = vadd.f32 %v99, 1.0
    %v102 = vadd.f32 %v100, 1.0
    %v103 = vrcp.pop %v101
    %v104 = vrcp.pop %v102
    %v105 = vmul.f32 %v103, 1.0614054
    %v106 = vmul.f32 %v104, 1.0614054
    %v107 = vadd.f32 %v105, -1.4531521
    %v108 = vadd.f32 %v106, -1.4531521
    %v109 = vmul.f32 %v107, %v103
    %v110 = vmul.f32 %v108, %v104
    %v111 = vadd.f32 %v109, 1.4214138
    %v112 = vadd.f32 %v110, 1.4214138
    %v113 = vmul.f32 %v111, %v103
    %v114 = vmul.f32 %v112, %v104
    %v115 = vadd.f32 %v113, -0.28449672
    %v116 = vadd.f32 %v114, -0.28449672
    %v117 = vmul.f32 %v115, %v103
    %v118 = vmul.f32 %v116, %v104
    %v119 = vadd.f32 %v117, 0.2548296
    %v120 = vadd.f32 %v118, 0.2548296
    %v121 = vmul.f32 %v119, %v103
    %v122 = vmul.f32 %v120, %v104
    %v123 = vsub.f32 0.0, %v97
    %v124 = vsub.f32 0.0, %v98
    %v125 = vmul.f32 %v123, %v97
    %v126 = vmul.f32 %v124, %v98
    %v127 = vmul.f32 %v125, 1.442695
    %v128 = vpow.pop %v127
    %v129 = vmul.f32 %v126, 1.442695
    %v130 = vpow.pop %v129
    %v131 = vmul.f32 %v121, %v128
    %v132 = vmul.f32 %v122, %v130
    %v133 = vsub.f32 1.0, %v131
    %v134 = vsub.f32 1.0, %v132
    %vm135 = vcmp.ge.f32.partialorder %v95, 0.0
    %vm136 = vcmp.ge.f32.partialorder %v96, 0.0
    %v137 = vsub.f32 0.0, %v133
    %v138 = vsub.f32 0.0, %v134
    %v139 = vsel %vm135, %v133, %v137
    %v140 = vsel %vm136, %v134, %v138
    %v141 = vadd.f32 %v139, 1.0
    %v142 = vadd.f32 %v140, 1.0
    %v143 = vmul.f32 %v93, %v141
    %v144 = vmul.f32 %v94, %v142
    %v145 = vpack.c.bf16 %v144, %v143
    %v146 = vld [vmem:[%s3] sm:$0xf]
    %v147 = vld [vmem:[%s3 + $0x4] sm:$0xf]
    %v148 = vld [vmem:[%s3 + $0x8] sm:$0xf]
    %v149 = vld [vmem:[%s3 + $0xc] sm:$0xf]
    %v150 = vld [vmem:[%s3 + $0x10] sm:$0xf]
    %v151 = vld [vmem:[%s3 + $0x14] sm:$0xf]
    %v152 = vld [vmem:[%s3 + $0x18] sm:$0xf]
    %v153 = vld [vmem:[%s3 + $0x1c] sm:$0xf]
    %v162 = vunpack.c.l.b16 %v146
    %v163 = vunpack.c.l.b16 %v147
    %v164 = vunpack.c.l.b16 %v148
    %v165 = vunpack.c.l.b16 %v149
    %v166 = vunpack.c.l.b16 %v150
    %v167 = vunpack.c.l.b16 %v151
    %v168 = vunpack.c.l.b16 %v152
    %v169 = vunpack.c.l.b16 %v153
    %v170 = vpack.c.b16 %v163, %v162
    %v171 = vpack.c.b16 %v165, %v164
    %v172 = vpack.c.b16 %v167, %v166
    %v173 = vpack.c.b16 %v169, %v168
    %vm178 = vcmask 523264
    %v180 = vsel %vm178, %v145, 0
    %182 = vmatprep.subr.bf16.mxu0 0
    %183 = vmatpush1.bf16.msra.mxu0 0
    %184 = vmatprep.subr.bf16.mxu0 0
    %185 = vmatpush1.bf16.msra.mxu0 0
    %186 = vmatprep.subr.bf16.mxu0 0
    %187 = vmatpush1.bf16.msra.mxu0 0
    %188 = vmatprep.subr.bf16.mxu0 0
    %189 = vmatpush1.bf16.msra.mxu0 0
    %190 = vmatprep.subr.bf16.mxu0 0
    %191 = vmatpush1.bf16.msra.mxu0 %v173
    %192 = vmatprep.subr.bf16.mxu0 0
    %193 = vmatpush1.bf16.msra.mxu0 %v172
    %194 = vmatprep.subr.bf16.mxu0 0
    %195 = vmatpush1.bf16.msra.mxu0 %v171
    %196 = vmatprep.subr.bf16.mxu0 0
    %197 = vmatpush1.bf16.msra.mxu0 %v170
    %198 = vmatprep.subr.bf16.mxu0 0
    %199 = vmatpush2.bf16.msra.mxu0 0
    %200 = vmatprep.subr.bf16.mxu0 0
    %201 = vmatpush2.bf16.msra.mxu0 0
    %202 = vmatprep.subr.bf16.mxu0 0
    %203 = vmatpush2.bf16.msra.mxu0 0
    %204 = vmatprep.subr.bf16.mxu0 0
    %205 = vmatpush2.bf16.msra.mxu0 0
    %206 = vmatprep.subr.bf16.mxu0 0
    %207 = vmatpush2.bf16.msra.mxu0 0
    %208 = vmatprep.subr.bf16.mxu0 0
    %209 = vmatpush2.bf16.msra.mxu0 0
    %210 = vmatprep.subr.bf16.mxu0 0
    %211 = vmatpush2.bf16.msra.mxu0 0
    %212 = vmatprep.subr.bf16.mxu0 0
    %213 = vmatpush2.bf16.msra.mxu0 0
    %214 = vmatprep.mubr.bf16.mxu0 0
    %215 = vmatmul.mubr.bf16.gmra.mxu0 %v180
    %v216 = vpop.f32.mrf.mxu0
    %v217 = vadd.f32 0.0, %v216
    %v218 = vpop.f32.mrf.mxu0
    %v219 = vpop.f32.mrf.mxu0
    %v220 = vadd.f32 0.0, %v219
    %v221 = vpop.f32.mrf.mxu0
    %222 = vdwg.mxu0
    %p223 = scmp.eq.s32.totalorder 0, 0
    // Predicated region
    $region22: #{tpu_custom_call.1} parent=1 // pred_check
      %p224 = pneg %p223
    $region23: #{tpu_custom_call.1} parent=1 // pred_check_branch
      %226 = sbr.rel (%p224) target = $region25
    $region24: #{tpu_custom_call.1} parent=1 // pred_region
      %227 = vst.msk [vmem:[#allocation2] sm:$0xff] %vm48, 0.0
      %228 = vst.msk [vmem:[#allocation2 + $0x8] sm:$0xff] %vm48, 0.0
    $region25: #{tpu_custom_call.1} parent=1 // pred_fallthru
      _
    %v229 = vld [vmem:[#allocation2] sm:$0xff]
    %v230 = vld [vmem:[#allocation2 + $0x8] sm:$0xff]
    %v231 = vadd.f32 %v229, %v217
    %v232 = vadd.f32 %v230, %v220
    %233 = vst.msk [vmem:[#allocation2] sm:$0xff] %vm48, %v231
    %234 = vst.msk [vmem:[#allocation2 + $0x8] sm:$0xff] %vm48, %v232
    // Predicated region
    $region26: #{tpu_custom_call.1} parent=1 // pred_check
      %p235 = pneg %p223
    $region27: #{tpu_custom_call.1} parent=1 // pred_check_branch
      %237 = sbr.rel (%p235) target = $region29
    $region28: #{tpu_custom_call.1} parent=1 // pred_region
      %v238 = vld [vmem:[#allocation2] sm:$0xff]
      %v239 = vld [vmem:[#allocation2 + $0x8] sm:$0xff]
      %v240 = vld [vmem:[%s4] sm:$0x1]
      %v242 = vlaneseq
      %v243 = vshrl.u32 %v242, 7
      %v244 = vsub.s32 0, %v243
      %v245 = vrot.slane %v240, %v244
      %v247 = vadd.f32 %v238, %v245
      %v248 = vadd.f32 %v239, %v245
      %249 = vst.msk [vmem:[#allocation3] sm:$0xff] %vm48, %v247
      %250 = vst.msk [vmem:[#allocation3 + $0x8] sm:$0xff] %vm48, %v248
    $region29: #{tpu_custom_call.1} parent=1 // pred_fallthru
      _
    // Predicated region
    $region30: #{tpu_custom_call.1} parent=1 // pred_check
      _
    $region31: #{tpu_custom_call.1} parent=1 // pred_check_branch
      %252 = sbr.rel (0) target = $region33
    $region32: #{tpu_custom_call.1} parent=1 // pred_region
      %s254 = ssub.s32 256, 256
      %255 = vsyncadd [#allocation4], %s254
      %s256 = sshll.u32 [#allocation3], 4
      %s257 = int_to_ptr.vmem [resolvable:$true] %s256
      %262 = dma.vmem_to_hbm [thread:$0]  %s257, 256, %s5, [#allocation4], 128, 128, 8
    $region33: #{tpu_custom_call.1} parent=1 // pred_fallthru
      _
    // Predicated region
    $region34: #{tpu_custom_call.1} parent=1 // pred_check
      _
    $region35: #{tpu_custom_call.1} parent=1 // pred_check_branch
      %264 = sbr.rel (0) target = $region37
    $region36: #{tpu_custom_call.1} parent=1 // pred_region
      %265 = dma.done [#allocation4], 256
    $region37: #{tpu_custom_call.1} parent=1 // pred_fallthru
      _
    %266 = vsyncpa [#allocation4], 1

</llo_original>
